<compile_context>
chip_gen: v7x
topology: tpu7x:2x2x1
jax: 0.10.0
libtpu: 0.0.40
codegen_flags: <defaults>
</compile_context>

<pallas_src>
import functools

import jax
import jax.numpy as jnp
from jax.experimental import pallas as pl
from jax.experimental.pallas import tpu as pltpu

OUT_LANES = 128  # lane-dense output width; column 0 holds the real (N, 1) result


def _round_up(x, m):
    return (x + m - 1) // m * m


def ntn_kernel(x1_ref, a_ref, b_ref, u_ref, out_ref):
    """out = relu(x1_tile @ A + b_eff) @ U_padded, one row-tile per grid step."""
    # Single MXU matmul per tile: (tm, D) @ (D, K_pad) -> (tm, K_pad), f32 accumulation.
    z = jnp.dot(x1_ref[...], a_ref[...], preferred_element_type=jnp.float32)
    z = jnp.maximum(z + b_ref[...], 0.0)                       # bias + relu (VPU)
    # Final projection against the zero-padded, lane-dense U: (tm, K_pad) @ (K_pad, 128).
    out = jnp.dot(z.astype(u_ref.dtype), u_ref[...], preferred_element_type=jnp.float32)
    out_ref[...] = out.astype(out_ref.dtype)


@functools.partial(jax.jit, static_argnames=("block_rows", "compute_dtype"))
def ntn_forward(x1, x2, V, W, b, U, *, block_rows=512, compute_dtype=jnp.float32):
    """NTN forward.  x1:(N,D) x2:(1,D) V:(K,2D) W:(K,D,D) b:(1,K) U:(K,1) -> (N,1)."""
    N, D = x1.shape
    K = V.shape[0]

    # ---- per-pair weight fusion (exact; removes W / the x2@V2 term from the kernel) ----
    wx2 = jnp.einsum("kde,e->kd", W, x2[0])                # (K, D)
    A = (V[:, :D] + wx2).T                                 # (D, K)   fused weight
    b_eff = b + x2 @ V[:, D:].T                            # (1, K)   effective bias

    # ---- pad K to a lane-dense multiple of 128; widen U to a 128-lane output matrix ----
    K_pad = _round_up(K, 128)
    A_p = jnp.zeros((D, K_pad), compute_dtype).at[:, :K].set(A.astype(compute_dtype))
    b_p = jnp.zeros((1, K_pad), jnp.float32).at[:, :K].set(b_eff.astype(jnp.float32))
    U_p = jnp.zeros((K_pad, OUT_LANES), compute_dtype).at[:K, 0].set(U[:, 0].astype(compute_dtype))
    # Padded feature columns give relu(0 + 0) = 0 and hit zero rows of U_p -> exact.

    # ---- tile N into row blocks (sublane multiple of 8); pad rows as needed ----
    tm = min(_round_up(block_rows, 8), _round_up(N, 8))
    N_pad = _round_up(N, tm)
    x1_p = jnp.pad(x1.astype(compute_dtype), ((0, N_pad - N), (0, 0)))

    # ---- explicit VMEM budget: double-buffered streams + resident weights ----
    isz = jnp.dtype(compute_dtype).itemsize
    vmem_bytes = (2 * tm * D * isz                  # x1 tiles (double-buffered)
                  + 2 * tm * OUT_LANES * 4          # output tiles (double-buffered)
                  + 2 * D * K_pad * isz             # A (resident, conservative x2)
                  + 2 * K_pad * 4                   # b_eff
                  + 2 * K_pad * OUT_LANES * isz)    # U_p
    vmem_limit = int(min(max(vmem_bytes + (1 << 20), 4 << 20), 64 << 20))  # <=64MiB (v7x)

    out = pl.pallas_call(
        ntn_kernel,
        out_shape=jax.ShapeDtypeStruct((N_pad, OUT_LANES), jnp.float32),
        grid=(N_pad // tm,),
        in_specs=[
            pl.BlockSpec((tm, D), lambda i: (i, 0)),             # x1 row stream
            pl.BlockSpec((D, K_pad), lambda i: (0, 0)),          # fused weight, resident
            pl.BlockSpec((1, K_pad), lambda i: (0, 0)),          # effective bias, resident
            pl.BlockSpec((K_pad, OUT_LANES), lambda i: (0, 0)),  # padded U, resident
        ],
        out_specs=pl.BlockSpec((tm, OUT_LANES), lambda i: (i, 0)),
        compiler_params=pltpu.CompilerParams(
            dimension_semantics=("parallel",),   # v7x: shard row blocks across both TCs
            vmem_limit_bytes=vmem_limit,
        ),
    )(x1_p, A_p, b_p, U_p)

    # Only the first N rows / column 0 are meaningful (lane-dense padding sliced off).
    return out[:N, :1].astype(x1.dtype)


def glorot(key, shape):
    """Matches torch.nn.init.xavier_normal_: std = sqrt(2 / (fan_in + fan_out))."""
    if len(shape) == 2:
        fan_out, fan_in = shape
    else:
        rf = 1
        for s in shape[2:]:
            rf *= s
        fan_in, fan_out = shape[1] * rf, shape[0] * rf
    std = (2.0 / (fan_in + fan_out)) ** 0.5
    return std * jax.random.normal(key, shape, dtype=jnp.float32)


def ntn_reference(x1, x2, V, W, b, U):
    """Plain-JAX transcription of interact_two_sets_of_vectors (relu, bias, apply_u)."""
    concat = jnp.concatenate([x1, jnp.ones_like(x1) * x2], axis=1)
    v_out = concat @ V.T                         # (N, K)
    wx2 = jnp.einsum("kde,e->kd", W, x2[0])      # (K, D)
    h = x1 @ wx2.T                               # (N, K)
    out = jax.nn.relu(v_out + h + b)             # (N, K)
    return out @ U                               # (N, 1)


if __name__ == "__main__":
    N, D, K = 8, 32, 16   # N rows, input_dim=32, feature_map_dim=16

    key = jax.random.PRNGKey(0)
    k_x1, k_x2, k_v, k_w, k_b, k_u = jax.random.split(key, 6)

    x1 = jax.random.normal(k_x1, (N, D), dtype=jnp.float32)
    x2 = jax.random.normal(k_x2, (1, D), dtype=jnp.float32)

    V = glorot(k_v, (K, 2 * D))
    W = glorot(k_w, (K, D, D))
    b = jax.random.normal(k_b, (1, K), dtype=jnp.float32)   # torch.randn(feature_map_dim)
    U = glorot(k_u, (K, 1))

    out = jax.block_until_ready(ntn_forward(x1, x2, V, W, b, U))
    ref = ntn_reference(x1, x2, V, W, b, U)

    assert out.shape == (N, 1)
    assert jnp.allclose(out, ref, rtol=1e-4, atol=1e-4), (out, ref)

    print("KERNEL_OK")
</pallas_src>

<mosaic_0001>
module attributes {stable_mosaic.version = 11 : i64} {
  func.func @ntn_kernel(%arg0: i32, %arg1: memref<8x32xf32, #tpu.memory_space<vmem>>, %arg2: memref<32x128xf32, #tpu.memory_space<vmem>>, %arg3: memref<1x128xf32, #tpu.memory_space<vmem>>, %arg4: memref<128x128xf32, #tpu.memory_space<vmem>>, %arg5: memref<8x128xf32, #tpu.memory_space<vmem>>) attributes {dimension_semantics = [#tpu.dimension_semantics<parallel>], iteration_bounds = array<i64: 1>, scalar_prefetch = 0 : i64, scratch_operands = 0 : i64, tpu.core_type = #tpu.core_type<tc>, window_params = [{transform_indices = @transform_0, window_bounds = array<i64: 8, 32>}, {pipeline_mode = #tpu.pipeline_mode<synchronous>, transform_indices = @transform_1, window_bounds = array<i64: 32, 128>}, {pipeline_mode = #tpu.pipeline_mode<synchronous>, transform_indices = @transform_2, window_bounds = array<i64: 1, 128>}, {pipeline_mode = #tpu.pipeline_mode<synchronous>, transform_indices = @transform_3, window_bounds = array<i64: 128, 128>}, {transform_indices = @transform_4, window_bounds = array<i64: 8, 128>}]} {
    %c0 = arith.constant 0 : index
    %c0_0 = arith.constant 0 : index
    %0 = vector.load %arg1[%c0, %c0_0] : memref<8x32xf32, #tpu.memory_space<vmem>>, vector<8x32xf32>
    %c0_1 = arith.constant 0 : index
    %c0_2 = arith.constant 0 : index
    %1 = vector.load %arg2[%c0_1, %c0_2] : memref<32x128xf32, #tpu.memory_space<vmem>>, vector<32x128xf32>
    %cst = arith.constant dense<0.000000e+00> : vector<8x128xf32>
    %2 = tpu.matmul %0, %1, %cst {dimension_numbers = #tpu.dot_dimension_numbers<[1], [0], [0], [1], [0, 0, 1, 1], [], []>} : vector<8x32xf32>, vector<32x128xf32>, vector<8x128xf32> -> vector<8x128xf32>
    %c0_3 = arith.constant 0 : index
    %c0_4 = arith.constant 0 : index
    %3 = vector.load %arg3[%c0_3, %c0_4] : memref<1x128xf32, #tpu.memory_space<vmem>>, vector<1x128xf32>
    %4 = vector.broadcast %3 : vector<1x128xf32> to vector<8x128xf32>
    %5 = arith.addf %2, %4 : vector<8x128xf32>
    %cst_5 = arith.constant 0.000000e+00 : f32
    %6 = vector.broadcast %cst_5 : f32 to vector<8x128xf32>
    %7 = arith.maximumf %5, %6 : vector<8x128xf32>
    %c0_6 = arith.constant 0 : index
    %c0_7 = arith.constant 0 : index
    %8 = vector.load %arg4[%c0_6, %c0_7] : memref<128x128xf32, #tpu.memory_space<vmem>>, vector<128x128xf32>
    %cst_8 = arith.constant dense<0.000000e+00> : vector<8x128xf32>
    %9 = tpu.matmul %7, %8, %cst_8 {dimension_numbers = #tpu.dot_dimension_numbers<[1], [0], [0], [1], [0, 0, 1, 1], [], []>} : vector<8x128xf32>, vector<128x128xf32>, vector<8x128xf32> -> vector<8x128xf32>
    %c0_9 = arith.constant 0 : index
    %c0_10 = arith.constant 0 : index
    %10 = vector.load %arg5[%c0_9, %c0_10] : memref<8x128xf32, #tpu.memory_space<vmem>>, vector<8x128xf32>
    tpu.vector_store %arg5[%c0_9, %c0_10], %9 {strides = array<i32>} : memref<8x128xf32, #tpu.memory_space<vmem>>, vector<8x128xf32>,
    return
  }
  func.func @transform_0(%arg0: i32) -> (i32, i32) {
    %c0_i32 = arith.constant 0 : i32
    %c0_i32_0 = arith.constant 0 : i32
    return %arg0, %c0_i32 : i32, i32
  }
  func.func @transform_1(%arg0: i32) -> (i32, i32) {
    %c0_i32 = arith.constant 0 : i32
    %c0_i32_0 = arith.constant 0 : i32
    %c0_i32_1 = arith.constant 0 : i32
    return %c0_i32, %c0_i32_0 : i32, i32
  }
  func.func @transform_2(%arg0: i32) -> (i32, i32) {
    %c0_i32 = arith.constant 0 : i32
    %c0_i32_0 = arith.constant 0 : i32
    %c0_i32_1 = arith.constant 0 : i32
    return %c0_i32, %c0_i32_0 : i32, i32
  }
  func.func @transform_3(%arg0: i32) -> (i32, i32) {
    %c0_i32 = arith.constant 0 : i32
    %c0_i32_0 = arith.constant 0 : i32
    %c0_i32_1 = arith.constant 0 : i32
    return %c0_i32, %c0_i32_0 : i32, i32
  }
  func.func @transform_4(%arg0: i32) -> (i32, i32) {
    %c0_i32 = arith.constant 0 : i32
    %c0_i32_0 = arith.constant 0 : i32
    return %arg0, %c0_i32 : i32, i32
  }
}

</mosaic_0001>

<llo_original>
// kernel: ntn_forward.1
$region0: #{ntn_forward.1}
  #allocation0 [shape = 'u32[]', space=smem, size = 0x4, offset = 0x4, fixed_abs, tag = 'smem constant byte address 0x4 - core index']
  #allocation1 [shape = 'u32[144,128]{1,0:T(1,128)}', space=vmem, size = 0x12000, scoped, tag = 'internal scratch']
  %s0 = inlined_call_operand.vmem [shape: f32[8,32], index: 0, kind: input, shape index: {}]
  %s1 = inlined_call_operand.vmem [shape: f32[32,128], index: 1, kind: input, shape index: {}]
  %s2 = inlined_call_operand.vmem [shape: f32[1,128], index: 2, kind: input, shape index: {}]
  %s3 = inlined_call_operand.vmem [shape: f32[128,128], index: 3, kind: input, shape index: {}]
  %s4 = inlined_call_operand.vmem [shape: f32[8,128], index: 4, kind: output, shape index: {}]
  %s5 = sld [smem:[#allocation0]]
  $region26: #{ntn_forward.1} parent=0
    _
  %s7 = ssub.s32 1, %s5
  %s8 = scalar_select 0, %s7, %s5
  // Predicated region
  $region2: #{ntn_forward.1} parent=0 // pred_check
    _
  $region3: #{ntn_forward.1} parent=0 // pred_check_branch
    %10 = sbr.rel (0) target = $region5
  $region4: #{ntn_forward.1} parent=0 // pred_region
    _
  $region5: #{ntn_forward.1} parent=0 // pred_fallthru
    _
  // Predicated region
  $region6: #{ntn_forward.1} parent=0 // pred_check
    _
  $region7: #{ntn_forward.1} parent=0 // pred_check_branch
    %12 = sbr.rel (0) target = $region9
  $region8: #{ntn_forward.1} parent=0 // pred_region
    _
  $region9: #{ntn_forward.1} parent=0 // pred_fallthru
    _
  // Predicated region
  $region10: #{ntn_forward.1} parent=0 // pred_check
    _
  $region11: #{ntn_forward.1} parent=0 // pred_check_branch
    %14 = sbr.rel (0) target = $region13
  $region12: #{ntn_forward.1} parent=0 // pred_region
    _
  $region13: #{ntn_forward.1} parent=0 // pred_fallthru
    _
  // Predicated region
  $region14: #{ntn_forward.1} parent=0 // pred_check
    _
  $region15: #{ntn_forward.1} parent=0 // pred_check_branch
    %16 = sbr.rel (0) target = $region17
  $region16: #{ntn_forward.1} parent=0 // pred_region
    _
  $region17: #{ntn_forward.1} parent=0 // pred_fallthru
    _
  %v17 = vld [vmem:[%s0] sm:$0xff]
  %v18 = vld [vmem:[%s1] sm:$0xff]
  %v19 = vld [vmem:[%s1 + $0x8] sm:$0xff]
  %v20 = vld [vmem:[%s1 + $0x10] sm:$0xff]
  %v21 = vld [vmem:[%s1 + $0x18] sm:$0xff]
  %v22 = vld [vmem:[%s2] sm:$0x1]
  %v24 = vlaneseq
  %v25 = vshrl.u32 %v24, 7
  %v26 = vsub.s32 0, %v25
  %v27 = vrot.slane %v22, %v26
  %vm29 = vcmask 261120
  %v31 = vsel %vm29, %v17, 0
  %33 = vmatprep.subr.mxu0 0.0
  %34 = vmatpush1.msra.mxu0 %v18
  %35 = vmatprep.subr.mxu0 0.0
  %36 = vmatpush1.msra.mxu0 %v19
  %37 = vmatprep.subr.mxu0 0.0
  %38 = vmatpush1.msra.mxu0 %v20
  %39 = vmatprep.subr.mxu0 0.0
  %40 = vmatpush1.msra.mxu0 %v21
  %41 = vmatprep.subr.mxu0 0.0
  %42 = vmatpush1.msra.mxu0 0.0
  %43 = vmatprep.subr.mxu0 0.0
  %44 = vmatpush1.msra.mxu0 0.0
  %45 = vmatprep.subr.mxu0 0.0
  %46 = vmatpush1.msra.mxu0 0.0
  %47 = vmatprep.subr.mxu0 0.0
  %48 = vmatpush1.msra.mxu0 0.0
  %49 = vmatprep.subr.mxu0 0.0
  %50 = vmatpush1.msra.mxu0 0.0
  %51 = vmatprep.subr.mxu0 0.0
  %52 = vmatpush1.msra.mxu0 0.0
  %53 = vmatprep.subr.mxu0 0.0
  %54 = vmatpush1.msra.mxu0 0.0
  %55 = vmatprep.subr.mxu0 0.0
  %56 = vmatpush1.msra.mxu0 0.0
  %57 = vmatprep.subr.mxu0 0.0
  %58 = vmatpush1.msra.mxu0 0.0
  %59 = vmatprep.subr.mxu0 0.0
  %60 = vmatpush1.msra.mxu0 0.0
  %61 = vmatprep.subr.mxu0 0.0
  %62 = vmatpush1.msra.mxu0 0.0
  %63 = vmatprep.subr.mxu0 0.0
  %64 = vmatpush1.msra.mxu0 0.0
  %65 = vmatprep.subr.mxu0 0.0
  %66 = vmatpush1.msra.mxu0 0.0
  %67 = vmatprep.subr.mxu0 0.0
  %68 = vmatpush1.msra.mxu0 0.0
  %69 = vmatprep.subr.mxu0 0.0
  %70 = vmatpush1.msra.mxu0 0.0
  %71 = vmatprep.subr.mxu0 0.0
  %72 = vmatpush1.msra.mxu0 0.0
  %73 = vmatprep.subr.mxu0 0.0
  %74 = vmatpush1.msra.mxu0 0.0
  %75 = vmatprep.subr.mxu0 0.0
  %76 = vmatpush1.msra.mxu0 0.0
  %77 = vmatprep.subr.mxu0 0.0
  %78 = vmatpush1.msra.mxu0 0.0
  %79 = vmatprep.subr.mxu0 0.0
  %80 = vmatpush1.msra.mxu0 0.0
  %81 = vmatprep.subr.mxu0 0.0
  %82 = vmatpush1.msra.mxu0 0.0
  %83 = vmatprep.subr.mxu0 0.0
  %84 = vmatpush1.msra.mxu0 0.0
  %85 = vmatprep.subr.mxu0 0.0
  %86 = vmatpush1.msra.mxu0 0.0
  %87 = vmatprep.subr.mxu0 0.0
  %88 = vmatpush1.msra.mxu0 0.0
  %89 = vmatprep.subr.mxu0 0.0
  %90 = vmatpush1.msra.mxu0 0.0
  %91 = vmatprep.subr.mxu0 0.0
  %92 = vmatpush1.msra.mxu0 0.0
  %93 = vmatprep.subr.mxu0 0.0
  %94 = vmatpush1.msra.mxu0 0.0
  %95 = vmatprep.subr.mxu0 0.0
  %96 = vmatpush1.msra.mxu0 0.0
  %97 = vmatprep.mubr.f32.mxu0 0.0
  %98 = vmatmul.mubr.f32.gmra.mrb[0].mxu0 %v31
  %v99 = vpop.f32.mrb[0].mxu0
  %v100 = vadd.f32 %v27, %v99
  %v101 = vpop.f32.mrb[0].mxu0
  %102 = vdwg.mxu0
  %v103 = vmax.f32 %v100, 0.0
  %v104 = vld [vmem:[%s3] sm:$0xff]
  %v105 = vld [vmem:[%s3 + $0x8] sm:$0xff]
  %v106 = vld [vmem:[%s3 + $0x10] sm:$0xff]
  %v107 = vld [vmem:[%s3 + $0x18] sm:$0xff]
  %v108 = vld [vmem:[%s3 + $0x20] sm:$0xff]
  %v109 = vld [vmem:[%s3 + $0x28] sm:$0xff]
  %v110 = vld [vmem:[%s3 + $0x30] sm:$0xff]
  %v111 = vld [vmem:[%s3 + $0x38] sm:$0xff]
  %v112 = vld [vmem:[%s3 + $0x40] sm:$0xff]
  %v113 = vld [vmem:[%s3 + $0x48] sm:$0xff]
  %v114 = vld [vmem:[%s3 + $0x50] sm:$0xff]
  %v115 = vld [vmem:[%s3 + $0x58] sm:$0xff]
  %v116 = vld [vmem:[%s3 + $0x60] sm:$0xff]
  %v117 = vld [vmem:[%s3 + $0x68] sm:$0xff]
  %v118 = vld [vmem:[%s3 + $0x70] sm:$0xff]
  %v119 = vld [vmem:[%s3 + $0x78] sm:$0xff]
  %120 = vmatprep.subr.mxu0 0.0
  %121 = vmatpush1.msra.mxu0 %v104
  %122 = vmatprep.subr.mxu0 0.0
  %123 = vmatpush1.msra.mxu0 %v105
  %124 = vmatprep.subr.mxu0 0.0
  %125 = vmatpush1.msra.mxu0 %v106
  %126 = vmatprep.subr.mxu0 0.0
  %127 = vmatpush1.msra.mxu0 %v107
  %128 = vmatprep.subr.mxu0 0.0
  %129 = vmatpush1.msra.mxu0 %v108
  %130 = vmatprep.subr.mxu0 0.0
  %131 = vmatpush1.msra.mxu0 %v109
  %132 = vmatprep.subr.mxu0 0.0
  %133 = vmatpush1.msra.mxu0 %v110
  %134 = vmatprep.subr.mxu0 0.0
  %135 = vmatpush1.msra.mxu0 %v111
  %136 = vmatprep.subr.mxu0 0.0
  %137 = vmatpush1.msra.mxu0 %v112
  %138 = vmatprep.subr.mxu0 0.0
  %139 = vmatpush1.msra.mxu0 %v113
  %140 = vmatprep.subr.mxu0 0.0
  %141 = vmatpush1.msra.mxu0 %v114
  %142 = vmatprep.subr.mxu0 0.0
  %143 = vmatpush1.msra.mxu0 %v115
  %144 = vmatprep.subr.mxu0 0.0
  %145 = vmatpush1.msra.mxu0 %v116
  %146 = vmatprep.subr.mxu0 0.0
  %147 = vmatpush1.msra.mxu0 %v117
  %148 = vmatprep.subr.mxu0 0.0
  %149 = vmatpush1.msra.mxu0 %v118
  %150 = vmatprep.subr.mxu0 0.0
  %151 = vmatpush1.msra.mxu0 %v119
  %152 = vmatprep.subr.mxu0 0.0
  %153 = vmatpush1.msra.mxu0 0.0
  %154 = vmatprep.subr.mxu0 0.0
  %155 = vmatpush1.msra.mxu0 0.0
  %156 = vmatprep.subr.mxu0 0.0
  %157 = vmatpush1.msra.mxu0 0.0
  %158 = vmatprep.subr.mxu0 0.0
  %159 = vmatpush1.msra.mxu0 0.0
  %160 = vmatprep.subr.mxu0 0.0
  %161 = vmatpush1.msra.mxu0 0.0
  %162 = vmatprep.subr.mxu0 0.0
  %163 = vmatpush1.msra.mxu0 0.0
  %164 = vmatprep.subr.mxu0 0.0
  %165 = vmatpush1.msra.mxu0 0.0
  %166 = vmatprep.subr.mxu0 0.0
  %167 = vmatpush1.msra.mxu0 0.0
  %168 = vmatprep.subr.mxu0 0.0
  %169 = vmatpush1.msra.mxu0 0.0
  %170 = vmatprep.subr.mxu0 0.0
  %171 = vmatpush1.msra.mxu0 0.0
  %172 = vmatprep.subr.mxu0 0.0
  %173 = vmatpush1.msra.mxu0 0.0
  %174 = vmatprep.subr.mxu0 0.0
  %175 = vmatpush1.msra.mxu0 0.0
  %176 = vmatprep.subr.mxu0 0.0
  %177 = vmatpush1.msra.mxu0 0.0
  %178 = vmatprep.subr.mxu0 0.0
  %179 = vmatpush1.msra.mxu0 0.0
  %180 = vmatprep.subr.mxu0 0.0
  %181 = vmatpush1.msra.mxu0 0.0
  %182 = vmatprep.subr.mxu0 0.0
  %183 = vmatpush1.msra.mxu0 0.0
  %184 = vmatprep.mubr.f32.mxu0 0.0
  %185 = vmatmul.mubr.f32.gmra.mrb[0].mxu0 %v103
  %v186 = vpop.f32.mrb[0].mxu0
  %v187 = vadd.f32 0.0, %v186
  %v188 = vpop.f32.mrb[0].mxu0
  %189 = vdwg.mxu0
  %190 = vst [vmem:[%s4] sm:$0xff] %v187
  // Predicated region
  $region18: #{ntn_forward.1} parent=0 // pred_check
    _
  $region19: #{ntn_forward.1} parent=0 // pred_check_branch
    %192 = sbr.rel (0) target = $region21
  $region20: #{ntn_forward.1} parent=0 // pred_region
    _
  $region21: #{ntn_forward.1} parent=0 // pred_fallthru
    _
  // Predicated region
  $region22: #{ntn_forward.1} parent=0 // pred_check
    _
  $region23: #{ntn_forward.1} parent=0 // pred_check_branch
    %194 = sbr.rel (0) target = $region25
  $region24: #{ntn_forward.1} parent=0 // pred_region
    _
  $region25: #{ntn_forward.1} parent=0 // pred_fallthru
    _

</llo_original>
